<compile_context>
chip_gen: v7x
topology: tpu7x:2x2x1
jax: 0.10.0
libtpu: 0.0.40
codegen_flags: <defaults>
</compile_context>

<pallas_src>
import numpy as np
import jax
import jax.numpy as jnp
from jax import lax
from jax.experimental import pallas as pl
from jax.experimental.pallas import tpu as pltpu

N1, N2, N3 = 10, 6, 2          # classes of cls1 / cls2 / cls3
NF = 128                       # fused head width, padded to the 128-lane tile
_RESIDENT_VMEM_BUDGET = 24 * 1024 * 1024   # conservative vs v7x's 64 MiB VMEM


def _round_up(v, m):
    return ((v + m - 1) // m) * m


def _head_epilogue(feat, wf, bf, dsl, out_ref):
    """Fused-head matmul + per-sample CE / argmax, packed lane-dense output."""
    # feat: (TB, DIMP) f32 backbone features (bias folded into bf).
    logits = jnp.dot(feat, wf, preferred_element_type=jnp.float32) + bf

    ds = dsl[:, 0:1]                                              # (TB, 1) i32
    lab = dsl[:, 1:2]                                             # (TB, 1) i32
    col = lax.broadcasted_iota(jnp.int32, logits.shape, 1)        # (TB, NF)

    # Per-row class range of the selected head.
    start = jnp.where(ds == 0, 0, jnp.where(ds == 1, N1, N1 + N2))
    ncls = jnp.where(ds == 0, N1, jnp.where(ds == 1, N2, N3))
    valid = (col >= start) & (col < start + ncls)

    neg = jnp.float32(-1e30)
    ml = jnp.where(valid, logits, neg)
    m = jnp.max(ml, axis=-1, keepdims=True)
    lse = m + jnp.log(jnp.sum(jnp.exp(ml - m), axis=-1, keepdims=True))
    picked = jnp.sum(jnp.where(col == start + lab, logits, 0.0),
                     axis=-1, keepdims=True)
    ce = lse - picked                                             # per-sample CE

    # First-occurrence argmax within the selected head (matches torch.max).
    pred = jnp.min(jnp.where(ml == m, col, NF),
                   axis=-1, keepdims=True) - start

    # Single packed, lane-dense output: col 0 = CE, col 1 = pred (exact small
    # ints in f32), remaining lanes 0.  Full 128-wide vst, no masked stores.
    out_ref[...] = jnp.where(col == 0, ce,
                             jnp.where(col == 1, pred.astype(jnp.float32), 0.0))


def _resident_kernel(x_ref, wbb_ref, wf_ref, bf_ref, dsl_ref, out_ref):
    # Whole backbone weight resident in VMEM; one bf16 MXU matmul per batch tile.
    feat = jnp.dot(x_ref[...], wbb_ref[...],
                   preferred_element_type=jnp.float32)
    _head_epilogue(feat, wf_ref[...], bf_ref[...], dsl_ref[...], out_ref)


def _ktiled_kernel(x_ref, wbb_ref, wf_ref, bf_ref, dsl_ref, out_ref, acc_ref):
    # K-tiled accumulation path for backbones too large to keep resident.
    k = pl.program_id(1)

    @pl.when(k == 0)
    def _():
        acc_ref[...] = jnp.zeros_like(acc_ref)

    acc_ref[...] += jnp.dot(x_ref[...], wbb_ref[...],
                            preferred_element_type=jnp.float32)

    @pl.when(k == pl.num_programs(1) - 1)
    def _():
        _head_epilogue(acc_ref[...], wf_ref[...], bf_ref[...], dsl_ref[...],
                       out_ref)


def simple_cross_stitch_forward(x, ds, label, params, *, tile_b=None,
                                tile_k=None, force_ktiled=False):
    """Returns (predictions (B,), loss scalar) matching SimpleCrossStitch.forward."""
    wbb, bbb, w1, b1, w2, b2, w3, b3, cs = params
    B = x.shape[0]
    K = int(np.prod(x.shape[1:]))
    dim = wbb.shape[1]
    dim_pad = _round_up(dim, 128)

    # ---- tile selection -------------------------------------------------
    if tile_b is None:
        b8 = _round_up(B, 8)
        if b8 <= 128:
            tile_b = b8                       # no more real rows to feed the MXU
        elif b8 <= 256:
            tile_b = _round_up((b8 + 1) // 2, 8)   # >=2 tiles: v7x 2-TC sharding
        else:
            tile_b = 256                      # big tiles: MXU rows + weight reuse
    tile_b = max(8, _round_up(int(tile_b), 8))
    b_pad = _round_up(B, tile_b)

    if tile_k is None:
        tile_k = 512                          # fewer grid steps, same weight bytes
    tile_k = max(128, _round_up(int(tile_k), 128))
    tile_k = min(tile_k, _round_up(K, 128))

    # ---- resident-weight feasibility (double-buffered blocks) -----------
    k_full = _round_up(K, 128)
    resident_bytes = (2 * tile_b * k_full * 2         # x blocks (bf16)
                      + 2 * k_full * dim_pad * 2      # wbb (bf16)
                      + 2 * dim_pad * NF * 4          # fused head W (f32)
                      + 2 * tile_b * NF * 4           # packed output blocks
                      + 2 * (NF * 4 + tile_b * 2 * 4))
    use_resident = (not force_ktiled) and resident_bytes <= _RESIDENT_VMEM_BUDGET
    k_pad = k_full if use_resident else _round_up(K, tile_k)

    # ---- operand prep: cast to bf16 BEFORE padding (no f32 temporaries) --
    x_p = jnp.pad(x.reshape(B, K).astype(jnp.bfloat16),
                  ((0, b_pad - B), (0, k_pad - K)))
    wbb_p = jnp.pad(wbb.astype(jnp.bfloat16),
                    ((0, k_pad - K), (0, dim_pad - dim)))

    # Fused head weight with cross-stitch scaling folded into the columns:
    #   logits1 = (feat*(cs0+cs1)) @ w1 + b1 = feat @ (w1*(cs0+cs1)) + b1, etc.
    # Kept f32 (tiny: dim_pad x 128) to preserve head precision.
    s1 = cs[0] + cs[1]
    s2 = cs[0] + cs[2]
    wf = jnp.zeros((dim_pad, NF), jnp.float32)
    wf = wf.at[:dim, 0:N1].set(w1 * s1)
    wf = wf.at[:dim, N1:N1 + N2].set(w2 * s2)
    wf = wf.at[:dim, N1 + N2:N1 + N2 + N3].set(w3)
    bf = jnp.zeros((1, NF), jnp.float32)
    bf = bf.at[:, 0:N1].set(b1)
    bf = bf.at[:, N1:N1 + N2].set(b2)
    bf = bf.at[:, N1 + N2:N1 + N2 + N3].set(b3)
    # Fold the backbone bias through the head: (feat+bbb)@wf+bf = feat@wf+bf_total.
    bbb_p = jnp.pad(bbb.astype(jnp.float32), ((0, 0), (0, dim_pad - dim)))
    bf_total = jnp.dot(bbb_p, wf) + bf

    # ds and label merged into one (b_pad, 2) int32 block.
    dsl = jnp.zeros((b_pad, 2), jnp.int32)
    dsl = dsl.at[:B, 0].set(ds.astype(jnp.int32))
    dsl = dsl.at[:B, 1].set(label.astype(jnp.int32))

    flops = 2 * b_pad * k_pad * dim_pad + 2 * b_pad * dim_pad * NF
    bytes_accessed = (x_p.size * 2 + wbb_p.size * 2 + wf.size * 4
                      + bf_total.size * 4 + dsl.size * 4 + b_pad * NF * 4)
    cost = pl.CostEstimate(flops=int(flops), transcendentals=int(b_pad * NF),
                           bytes_accessed=int(bytes_accessed))
    out_shape = jax.ShapeDtypeStruct((b_pad, NF), jnp.float32)

    if use_resident:
        grid_spec = pltpu.PrefetchScalarGridSpec(
            num_scalar_prefetch=0,
            grid=(b_pad // tile_b,),
            in_specs=[
                pl.BlockSpec((tile_b, k_pad), lambda i: (i, 0)),       # x
                pl.BlockSpec((k_pad, dim_pad), lambda i: (0, 0)),      # backbone W
                pl.BlockSpec((dim_pad, NF), lambda i: (0, 0)),         # fused head W
                pl.BlockSpec((1, NF), lambda i: (0, 0)),               # fused head b
                pl.BlockSpec((tile_b, 2), lambda i: (i, 0)),           # ds/label
            ],
            out_specs=pl.BlockSpec((tile_b, NF), lambda i: (i, 0)),
        )
        kernel = _resident_kernel
        dims = ("parallel",)
        vmem_est = resident_bytes
    else:
        grid_spec = pltpu.PrefetchScalarGridSpec(
            num_scalar_prefetch=0,
            grid=(b_pad // tile_b, k_pad // tile_k),
            in_specs=[
                pl.BlockSpec((tile_b, tile_k), lambda i, k: (i, k)),    # x
                pl.BlockSpec((tile_k, dim_pad), lambda i, k: (k, 0)),   # backbone W
                pl.BlockSpec((dim_pad, NF), lambda i, k: (0, 0)),       # fused head W
                pl.BlockSpec((1, NF), lambda i, k: (0, 0)),             # fused head b
                pl.BlockSpec((tile_b, 2), lambda i, k: (i, 0)),         # ds/label
            ],
            out_specs=pl.BlockSpec((tile_b, NF), lambda i, k: (i, 0)),
            scratch_shapes=[pltpu.VMEM((tile_b, dim_pad), jnp.float32)],
        )
        kernel = _ktiled_kernel
        dims = ("parallel", "arbitrary")
        vmem_est = (2 * tile_b * tile_k * 2 + 2 * tile_k * dim_pad * 2
                    + 2 * dim_pad * NF * 4 + 2 * tile_b * NF * 4
                    + tile_b * dim_pad * 4 + 2 * (NF * 4 + tile_b * 2 * 4))

    # Explicit VMEM budget with headroom; capped safely below v7x's 64 MiB.
    vmem_limit = int(min(max(vmem_est * 3 // 2 + (1 << 20), 32 * 1024 * 1024),
                         48 * 1024 * 1024))

    out = pl.pallas_call(
        kernel,
        out_shape=out_shape,
        grid_spec=grid_spec,
        compiler_params=pltpu.CompilerParams(
            dimension_semantics=dims,
            vmem_limit_bytes=vmem_limit),
        cost_estimate=cost,
    )(x_p, wbb_p, wf, bf_total, dsl)

    preds = out[:B, 1].astype(jnp.int32)          # col 1 = prediction
    loss = jnp.sum(out[:B, 0])                    # col 0 = per-sample CE
    return preds, loss


def _reference_forward(x, ds, label, params):
    """Vectorized pure-JAX reference mirroring the PyTorch forward."""
    wbb, bbb, w1, b1, w2, b2, w3, b3, cs = params
    B = x.shape[0]
    xf = x.reshape(B, -1).astype(jnp.bfloat16)
    feat = jnp.dot(xf, wbb.astype(jnp.bfloat16),
                   preferred_element_type=jnp.float32) + bbb
    o1 = (feat * (cs[0] + cs[1])) @ w1 + b1
    o2 = (feat * (cs[0] + cs[2])) @ w2 + b2
    o3 = feat @ w3 + b3

    def stats(o, lab):
        pred = jnp.argmax(o, axis=-1).astype(jnp.int32)
        m = jnp.max(o, axis=-1)
        lse = m + jnp.log(jnp.sum(jnp.exp(o - m[:, None]), axis=-1))
        n = o.shape[-1]
        picked = jnp.take_along_axis(
            o, jnp.clip(lab, 0, n - 1)[:, None], axis=-1)[:, 0]
        return pred, lse - picked

    ds = ds.astype(jnp.int32)
    lab = label.astype(jnp.int32)
    p1, c1 = stats(o1, lab)
    p2, c2 = stats(o2, lab)
    p3, c3 = stats(o3, lab)
    pred = jnp.where(ds == 0, p1, jnp.where(ds == 1, p2, p3))
    ce = jnp.where(ds == 0, c1, jnp.where(ds == 1, c2, c3))
    return pred, jnp.sum(ce)


def init_params(key, in_features, dim):
    ks = jax.random.split(key, 8)
    s_bb = 1.0 / np.sqrt(in_features)
    s_h = 1.0 / np.sqrt(dim)
    wbb = jax.random.uniform(ks[0], (in_features, dim), jnp.float32, -s_bb, s_bb)
    bbb = jax.random.uniform(ks[1], (1, dim), jnp.float32, -s_bb, s_bb)
    w1 = jax.random.uniform(ks[2], (dim, 10), jnp.float32, -s_h, s_h)
    b1 = jax.random.uniform(ks[3], (1, 10), jnp.float32, -s_h, s_h)
    w2 = jax.random.uniform(ks[4], (dim, 6), jnp.float32, -s_h, s_h)
    b2 = jax.random.uniform(ks[5], (1, 6), jnp.float32, -s_h, s_h)
    w3 = jax.random.uniform(ks[6], (dim, 2), jnp.float32, -s_h, s_h)
    b3 = jax.random.uniform(ks[7], (1, 2), jnp.float32, -s_h, s_h)
    cs = jnp.array([0.5, 0.5, 0.5], jnp.float32)   # nn.Parameter([0.5, 0.5, 0.5])
    return (wbb, bbb, w1, b1, w2, b2, w3, b3, cs)


if __name__ == "__main__":
    key = jax.random.PRNGKey(0)
    k_x, k_p, k_x2, k_d, k_l = jax.random.split(key, 5)

    # --- Small case (shapes consistent with the module's toy usage) ---
    B, C, H, W = 2, 4, 16, 16
    DIM = 32
    x = jax.random.normal(k_x, (B, C, H, W), jnp.float32)       # NCHW like PyTorch
    ds = jnp.array([0, 1], jnp.int32)                            # task id per sample
    label = jnp.array([3, 2], jnp.int32)                         # valid for chosen heads
    params = init_params(k_p, C * H * W, DIM)

    preds, loss = simple_cross_stitch_forward(x, ds, label, params)
    preds, loss = jax.block_until_ready((preds, loss))
    ref_preds, ref_loss = _reference_forward(x, ds, label, params)
    assert np.array_equal(np.asarray(preds), np.asarray(ref_preds)), (preds, ref_preds)
    assert np.allclose(float(loss), float(ref_loss), rtol=5e-4, atol=5e-4), (loss, ref_loss)

    # --- Larger batch: exercises big batch tiles, the resident-weight path
    #     and the k-tiled accumulator path. ---
    B2 = 256
    x2 = jax.random.normal(k_x2, (B2, C, H, W), jnp.float32)
    ds2 = jax.random.randint(k_d, (B2,), 0, 3, dtype=jnp.int32)
    ncls2 = jnp.where(ds2 == 0, 10, jnp.where(ds2 == 1, 6, 2))
    label2 = jax.random.randint(k_l, (B2,), 0, 10_000, dtype=jnp.int32) % ncls2
    ref_p2, ref_l2 = _reference_forward(x2, ds2, label2, params)

    for forced in (False, True):
        p2, l2 = simple_cross_stitch_forward(x2, ds2, label2, params,
                                             force_ktiled=forced)
        p2, l2 = jax.block_until_ready((p2, l2))
        assert np.array_equal(np.asarray(p2), np.asarray(ref_p2)), forced
        assert np.allclose(float(l2), float(ref_l2), rtol=1e-3, atol=1e-2), (forced, l2, ref_l2)

    print("KERNEL_OK")
</pallas_src>

<mosaic_0001>
module attributes {stable_mosaic.version = 11 : i64} {
  func.func @_resident_kernel(%arg0: i32, %arg1: memref<8x1024xbf16, #tpu.memory_space<vmem>>, %arg2: memref<1024x128xbf16, #tpu.memory_space<vmem>>, %arg3: memref<128x128xf32, #tpu.memory_space<vmem>>, %arg4: memref<1x128xf32, #tpu.memory_space<vmem>>, %arg5: memref<8x2xi32, #tpu.memory_space<vmem>>, %arg6: memref<8x128xf32, #tpu.memory_space<vmem>>) attributes {dimension_semantics = [#tpu.dimension_semantics<parallel>], iteration_bounds = array<i64: 1>, scalar_prefetch = 0 : i64, scratch_operands = 0 : i64, tpu.core_type = #tpu.core_type<tc>, window_params = [{transform_indices = @transform_0, window_bounds = array<i64: 8, 1024>}, {pipeline_mode = #tpu.pipeline_mode<synchronous>, transform_indices = @transform_1, window_bounds = array<i64: 1024, 128>}, {pipeline_mode = #tpu.pipeline_mode<synchronous>, transform_indices = @transform_2, window_bounds = array<i64: 128, 128>}, {pipeline_mode = #tpu.pipeline_mode<synchronous>, transform_indices = @transform_3, window_bounds = array<i64: 1, 128>}, {transform_indices = @transform_4, window_bounds = array<i64: 8, 2>}, {transform_indices = @transform_5, window_bounds = array<i64: 8, 128>}]} {
    %c0 = arith.constant 0 : index
    %c0_0 = arith.constant 0 : index
    %0 = vector.load %arg1[%c0, %c0_0] : memref<8x1024xbf16, #tpu.memory_space<vmem>>, vector<8x1024xbf16>
    %c0_1 = arith.constant 0 : index
    %c0_2 = arith.constant 0 : index
    %1 = vector.load %arg2[%c0_1, %c0_2] : memref<1024x128xbf16, #tpu.memory_space<vmem>>, vector<1024x128xbf16>
    %cst = arith.constant dense<0.000000e+00> : vector<8x128xf32>
    %2 = tpu.matmul %0, %1, %cst {dimension_numbers = #tpu.dot_dimension_numbers<[1], [0], [0], [1], [0, 0, 1, 1], [], []>} : vector<8x1024xbf16>, vector<1024x128xbf16>, vector<8x128xf32> -> vector<8x128xf32>
    %c0_3 = arith.constant 0 : index
    %c0_4 = arith.constant 0 : index
    %3 = vector.load %arg3[%c0_3, %c0_4] : memref<128x128xf32, #tpu.memory_space<vmem>>, vector<128x128xf32>
    %c0_5 = arith.constant 0 : index
    %c0_6 = arith.constant 0 : index
    %4 = vector.load %arg4[%c0_5, %c0_6] : memref<1x128xf32, #tpu.memory_space<vmem>>, vector<1x128xf32>
    %c0_7 = arith.constant 0 : index
    %c0_8 = arith.constant 0 : index
    %5 = vector.load %arg5[%c0_7, %c0_8] : memref<8x2xi32, #tpu.memory_space<vmem>>, vector<8x2xi32>
    %cst_9 = arith.constant dense<0.000000e+00> : vector<8x128xf32>
    %6 = tpu.matmul %2, %3, %cst_9 {dimension_numbers = #tpu.dot_dimension_numbers<[1], [0], [0], [1], [0, 0, 1, 1], [], []>} : vector<8x128xf32>, vector<128x128xf32>, vector<8x128xf32> -> vector<8x128xf32>
    %7 = vector.broadcast %4 : vector<1x128xf32> to vector<8x128xf32>
    %8 = arith.addf %6, %7 : vector<8x128xf32>
    %9 = vector.extract_strided_slice %5 {offsets = [0, 0], sizes = [8, 1], strides = [1, 1]} : vector<8x2xi32> to vector<8x1xi32>
    %10 = vector.extract_strided_slice %5 {offsets = [0, 1], sizes = [8, 1], strides = [1, 1]} : vector<8x2xi32> to vector<8x1xi32>
    %11 = tpu.iota {dimensions = array<i32: 1>} : vector<8x128xi32>
    %c0_i32 = arith.constant 0 : i32
    %12 = vector.broadcast %c0_i32 : i32 to vector<8x1xi32>
    %13 = arith.cmpi eq, %9, %12 : vector<8x1xi32>
    %c1_i32 = arith.constant 1 : i32
    %14 = vector.broadcast %c1_i32 : i32 to vector<8x1xi32>
    %15 = arith.cmpi eq, %9, %14 : vector<8x1xi32>
    %c10_i32 = arith.constant 10 : i32
    %c16_i32 = arith.constant 16 : i32
    %16 = vector.broadcast %c10_i32 : i32 to vector<8x1xi32>
    %17 = vector.broadcast %c16_i32 : i32 to vector<8x1xi32>
    %18 = arith.select %15, %16, %17 : vector<8x1xi1>, vector<8x1xi32>
    %c0_i32_10 = arith.constant 0 : i32
    %19 = vector.broadcast %c0_i32_10 : i32 to vector<8x1xi32>
    %20 = arith.select %13, %19, %18 : vector<8x1xi1>, vector<8x1xi32>
    %c0_i32_11 = arith.constant 0 : i32
    %21 = vector.broadcast %c0_i32_11 : i32 to vector<8x1xi32>
    %22 = arith.cmpi eq, %9, %21 : vector<8x1xi32>
    %c1_i32_12 = arith.constant 1 : i32
    %23 = vector.broadcast %c1_i32_12 : i32 to vector<8x1xi32>
    %24 = arith.cmpi eq, %9, %23 : vector<8x1xi32>
    %c6_i32 = arith.constant 6 : i32
    %c2_i32 = arith.constant 2 : i32
    %25 = vector.broadcast %c6_i32 : i32 to vector<8x1xi32>
    %26 = vector.broadcast %c2_i32 : i32 to vector<8x1xi32>
    %27 = arith.select %24, %25, %26 : vector<8x1xi1>, vector<8x1xi32>
    %c10_i32_13 = arith.constant 10 : i32
    %28 = vector.broadcast %c10_i32_13 : i32 to vector<8x1xi32>
    %29 = arith.select %22, %28, %27 : vector<8x1xi1>, vector<8x1xi32>
    %30 = vector.broadcast %20 : vector<8x1xi32> to vector<8x128xi32>
    %31 = arith.cmpi sge, %11, %30 : vector<8x128xi32>
    %32 = arith.addi %20, %29 : vector<8x1xi32>
    %33 = vector.broadcast %32 : vector<8x1xi32> to vector<8x128xi32>
    %34 = arith.cmpi slt, %11, %33 : vector<8x128xi32>
    %35 = arith.andi %31, %34 : vector<8x128xi1>
    %cst_14 = arith.constant -1.000000e+30 : f32
    %36 = vector.broadcast %cst_14 : f32 to vector<8x128xf32>
    %37 = arith.select %35, %8, %36 : vector<8x128xi1>, vector<8x128xf32>
    %cst_15 = arith.constant dense<0xFF800000> : vector<8xf32>
    %38 = vector.multi_reduction <maximumf>, %37, %cst_15 [1] : vector<8x128xf32> to vector<8xf32>
    %39 = vector.shape_cast %38 : vector<8xf32> to vector<8x1xf32>
    %40 = vector.broadcast %39 : vector<8x1xf32> to vector<8x128xf32>
    %41 = arith.subf %37, %40 : vector<8x128xf32>
    %42 = math.exp %41 : vector<8x128xf32>
    %cst_16 = arith.constant dense<0.000000e+00> : vector<8xf32>
    %43 = vector.multi_reduction <add>, %42, %cst_16 [1] : vector<8x128xf32> to vector<8xf32>
    %44 = vector.shape_cast %43 : vector<8xf32> to vector<8x1xf32>
    %45 = math.log %44 : vector<8x1xf32>
    %46 = arith.addf %39, %45 : vector<8x1xf32>
    %47 = arith.addi %20, %10 : vector<8x1xi32>
    %48 = vector.broadcast %47 : vector<8x1xi32> to vector<8x128xi32>
    %49 = arith.cmpi eq, %11, %48 : vector<8x128xi32>
    %cst_17 = arith.constant 0.000000e+00 : f32
    %50 = vector.broadcast %cst_17 : f32 to vector<8x128xf32>
    %51 = arith.select %49, %8, %50 : vector<8x128xi1>, vector<8x128xf32>
    %cst_18 = arith.constant dense<0.000000e+00> : vector<8xf32>
    %52 = vector.multi_reduction <add>, %51, %cst_18 [1] : vector<8x128xf32> to vector<8xf32>
    %53 = vector.shape_cast %52 : vector<8xf32> to vector<8x1xf32>
    %54 = arith.subf %46, %53 : vector<8x1xf32>
    %55 = vector.broadcast %39 : vector<8x1xf32> to vector<8x128xf32>
    %56 = arith.cmpf oeq, %37, %55 : vector<8x128xf32>
    %c128_i32 = arith.constant 128 : i32
    %57 = vector.broadcast %c128_i32 : i32 to vector<8x128xi32>
    %58 = arith.select %56, %11, %57 : vector<8x128xi1>, vector<8x128xi32>
    %cst_19 = arith.constant dense<2147483647> : vector<8xi32>
    %59 = vector.multi_reduction <minsi>, %58, %cst_19 [1] : vector<8x128xi32> to vector<8xi32>
    %60 = vector.shape_cast %59 : vector<8xi32> to vector<8x1xi32>
    %61 = arith.subi %60, %20 : vector<8x1xi32>
    %c0_i32_20 = arith.constant 0 : i32
    %62 = vector.broadcast %c0_i32_20 : i32 to vector<8x128xi32>
    %63 = arith.cmpi eq, %11, %62 : vector<8x128xi32>
    %c1_i32_21 = arith.constant 1 : i32
    %64 = vector.broadcast %c1_i32_21 : i32 to vector<8x128xi32>
    %65 = arith.cmpi eq, %11, %64 : vector<8x128xi32>
    %66 = arith.sitofp %61 : vector<8x1xi32> to vector<8x1xf32>
    %cst_22 = arith.constant 0.000000e+00 : f32
    %67 = vector.shape_cast %66 : vector<8x1xf32> to vector<8x1xf32>
    %68 = vector.broadcast %67 : vector<8x1xf32> to vector<8x128xf32>
    %69 = vector.broadcast %cst_22 : f32 to vector<8x128xf32>
    %70 = arith.select %65, %68, %69 : vector<8x128xi1>, vector<8x128xf32>
    %71 = vector.shape_cast %54 : vector<8x1xf32> to vector<8x1xf32>
    %72 = vector.broadcast %71 : vector<8x1xf32> to vector<8x128xf32>
    %73 = arith.select %63, %72, %70 : vector<8x128xi1>, vector<8x128xf32>
    %c0_23 = arith.constant 0 : index
    %c0_24 = arith.constant 0 : index
    %74 = vector.load %arg6[%c0_23, %c0_24] : memref<8x128xf32, #tpu.memory_space<vmem>>, vector<8x128xf32>
    tpu.vector_store %arg6[%c0_23, %c0_24], %73 {strides = array<i32>} : memref<8x128xf32, #tpu.memory_space<vmem>>, vector<8x128xf32>,
    return
  }
  func.func @transform_0(%arg0: i32) -> (i32, i32) {
    %c0_i32 = arith.constant 0 : i32
    %c0_i32_0 = arith.constant 0 : i32
    return %arg0, %c0_i32 : i32, i32
  }
  func.func @transform_1(%arg0: i32) -> (i32, i32) {
    %c0_i32 = arith.constant 0 : i32
    %c0_i32_0 = arith.constant 0 : i32
    %c0_i32_1 = arith.constant 0 : i32
    return %c0_i32, %c0_i32_0 : i32, i32
  }
  func.func @transform_2(%arg0: i32) -> (i32, i32) {
    %c0_i32 = arith.constant 0 : i32
    %c0_i32_0 = arith.constant 0 : i32
    %c0_i32_1 = arith.constant 0 : i32
    return %c0_i32, %c0_i32_0 : i32, i32
  }
  func.func @transform_3(%arg0: i32) -> (i32, i32) {
    %c0_i32 = arith.constant 0 : i32
    %c0_i32_0 = arith.constant 0 : i32
    %c0_i32_1 = arith.constant 0 : i32
    return %c0_i32, %c0_i32_0 : i32, i32
  }
  func.func @transform_4(%arg0: i32) -> (i32, i32) {
    %c0_i32 = arith.constant 0 : i32
    %c0_i32_0 = arith.constant 0 : i32
    return %arg0, %c0_i32 : i32, i32
  }
  func.func @transform_5(%arg0: i32) -> (i32, i32) {
    %c0_i32 = arith.constant 0 : i32
    %c0_i32_0 = arith.constant 0 : i32
    return %arg0, %c0_i32 : i32, i32
  }
}

</mosaic_0001>

<llo_original>
// kernel: tpu_custom_call.1
$region0: #{tpu_custom_call.1}
  #allocation0 [shape = 'u32[]', space=smem, size = 0x4, offset = 0x4, fixed_abs, tag = 'smem constant byte address 0x4 - core index']
  #allocation1 [shape = 'u32[144,128]{1,0:T(1,128)}', space=vmem, size = 0x12000, scoped, tag = 'internal scratch']
  %s0 = inlined_call_operand.hbm [shape: bf16[8,1024], index: 0, kind: input, shape index: {}]
  %s1 = inlined_call_operand.hbm [shape: bf16[1024,128], index: 1, kind: input, shape index: {}]
  %s2 = inlined_call_operand.hbm [shape: f32[128,128], index: 2, kind: input, shape index: {}]
  %s3 = inlined_call_operand.vmem [shape: f32[1,128], index: 3, kind: input, shape index: {}]
  %s4 = inlined_call_operand.vmem [shape: s32[8,2], index: 4, kind: input, shape index: {}]
  %s5 = inlined_call_operand.hbm [shape: f32[8,128], index: 5, kind: output, shape index: {}]
  %s6 = sld [smem:[#allocation0]]
  $region42: #{tpu_custom_call.1} parent=0
    _
  %s8 = ssub.s32 1, %s6
  %s9 = scalar_select 0, %s8, %s6
  $region1: #{tpu_custom_call.1} parent=0
    #allocation2 [shape = 'u8[16384]{0}', space=vmem, size = 0x4000, scoped, tag = 'input window, operand 0, single buffered']
    #allocation3 [shape = 's32[1]{0}', space=sflag, size = 0x4, scoped, tag = 'scoped memory for tpu_custom_call.1']
    #allocation4 [shape = 's32[1]{0}', space=sflag, size = 0x4, scoped, tag = 'scoped memory for tpu_custom_call.1']
    #allocation5 [shape = 'u8[262144]{0}', space=vmem, size = 0x40000, scoped, tag = 'input window, operand 1, single buffered']
    #allocation6 [shape = 's32[1]{0}', space=sflag, size = 0x4, scoped, tag = 'scoped memory for tpu_custom_call.1']
    #allocation7 [shape = 'u8[65536]{0}', space=vmem, size = 0x10000, scoped, tag = 'input window, operand 2, single buffered']
    #allocation8 [shape = 'u8[4096]{0}', space=vmem, size = 0x1000, scoped, tag = 'output window, operand 0, single buffered']
    %10 = vsyncpa [#allocation3], 0
    %11 = vsyncpa [#allocation6], 0
    %12 = vsyncpa [#allocation4], 0
    // Predicated region
    $region2: #{tpu_custom_call.1} parent=1 // pred_check
      _
    $region3: #{tpu_custom_call.1} parent=1 // pred_check_branch
      %14 = sbr.rel (0) target = $region5
    $region4: #{tpu_custom_call.1} parent=1 // pred_region
      %s16 = ssub.s32 512, 512
      %17 = vsyncadd [#allocation3], %s16
      %s19 = sshll.u32 [#allocation2], 4
      %s20 = int_to_ptr.vmem [resolvable:$true] %s19
      %22 = dma.hbm_to_vmem [thread:$0]  %s0, 512, %s20, [#allocation3]
    $region5: #{tpu_custom_call.1} parent=1 // pred_fallthru
      _
    // Predicated region
    $region6: #{tpu_custom_call.1} parent=1 // pred_check
      _
    $region7: #{tpu_custom_call.1} parent=1 // pred_check_branch
      %24 = sbr.rel (0) target = $region9
    $region8: #{tpu_custom_call.1} parent=1 // pred_region
      %s26 = ssub.s32 8192, 8192
      %27 = vsyncadd [#allocation6], %s26
      %s28 = sshll.u32 [#allocation5], 4
      %s29 = int_to_ptr.vmem [resolvable:$true] %s28
      %34 = dma.hbm_to_vmem [thread:$0]  %s1, 8192, %s29, [#allocation6], 64, 64, 4
    $region9: #{tpu_custom_call.1} parent=1 // pred_fallthru
      _
    // Predicated region
    $region10: #{tpu_custom_call.1} parent=1 // pred_check
      _
    $region11: #{tpu_custom_call.1} parent=1 // pred_check_branch
      %36 = sbr.rel (0) target = $region13
    $region12: #{tpu_custom_call.1} parent=1 // pred_region
      %s38 = ssub.s32 2048, 2048
      %39 = vsyncadd [#allocation6], %s38
      %s40 = sshll.u32 [#allocation7], 4
      %s41 = int_to_ptr.vmem [resolvable:$true] %s40
      %46 = dma.hbm_to_vmem [thread:$0]  %s2, 2048, %s41, [#allocation6], 128, 128, 8
    $region13: #{tpu_custom_call.1} parent=1 // pred_fallthru
      _
    // Predicated region
    $region14: #{tpu_custom_call.1} parent=1 // pred_check
      _
    $region15: #{tpu_custom_call.1} parent=1 // pred_check_branch
      %48 = sbr.rel (0) target = $region17
    $region16: #{tpu_custom_call.1} parent=1 // pred_region
      _
    $region17: #{tpu_custom_call.1} parent=1 // pred_fallthru
      _
    // Predicated region
    $region18: #{tpu_custom_call.1} parent=1 // pred_check
      _
    $region19: #{tpu_custom_call.1} parent=1 // pred_check_branch
      %50 = sbr.rel (0) target = $region21
    $region20: #{tpu_custom_call.1} parent=1 // pred_region
      _
    $region21: #{tpu_custom_call.1} parent=1 // pred_fallthru
      _
    // Predicated region
    $region22: #{tpu_custom_call.1} parent=1 // pred_check
      _
    $region23: #{tpu_custom_call.1} parent=1 // pred_check_branch
      %52 = sbr.rel (0) target = $region25
    $region24: #{tpu_custom_call.1} parent=1 // pred_region
      %53 = dma.done [#allocation3], 512
    $region25: #{tpu_custom_call.1} parent=1 // pred_fallthru
      _
    // Predicated region
    $region26: #{tpu_custom_call.1} parent=1 // pred_check
      _
    $region27: #{tpu_custom_call.1} parent=1 // pred_check_branch
      %55 = sbr.rel (0) target = $region29
    $region28: #{tpu_custom_call.1} parent=1 // pred_region
      %56 = dma.done [#allocation6], 8192
    $region29: #{tpu_custom_call.1} parent=1 // pred_fallthru
      _
    // Predicated region
    $region30: #{tpu_custom_call.1} parent=1 // pred_check
      _
    $region31: #{tpu_custom_call.1} parent=1 // pred_check_branch
      %58 = sbr.rel (0) target = $region33
    $region32: #{tpu_custom_call.1} parent=1 // pred_region
      %59 = dma.done [#allocation6], 2048
    $region33: #{tpu_custom_call.1} parent=1 // pred_fallthru
      _
    %v61 = vld [vmem:[#allocation2] sm:$0xff]
    %v62 = vld [vmem:[#allocation2 + $0x8] sm:$0xff]
    %v63 = vld [vmem:[#allocation2 + $0x10] sm:$0xff]
    %v64 = vld [vmem:[#allocation2 + $0x18] sm:$0xff]
    %v65 = vld [vmem:[#allocation5] sm:$0xf]
    %v66 = vld [vmem:[#allocation5 + $0x4] sm:$0xf]
    %v67 = vld [vmem:[#allocation5 + $0x8] sm:$0xf]
    %v68 = vld [vmem:[#allocation5 + $0xc] sm:$0xf]
    %v69 = vld [vmem:[#allocation5 + $0x10] sm:$0xf]
    %v70 = vld [vmem:[#allocation5 + $0x14] sm:$0xf]
    %v71 = vld [vmem:[#allocation5 + $0x18] sm:$0xf]
    %v72 = vld [vmem:[#allocation5 + $0x1c] sm:$0xf]
    %v73 = vld [vmem:[#allocation5 + $0x20] sm:$0xf]
    %v74 = vld [vmem:[#allocation5 + $0x24] sm:$0xf]
    %v75 = vld [vmem:[#allocation5 + $0x28] sm:$0xf]
    %v76 = vld [vmem:[#allocation5 + $0x2c] sm:$0xf]
    %v77 = vld [vmem:[#allocation5 + $0x30] sm:$0xf]
    %v78 = vld [vmem:[#allocation5 + $0x34] sm:$0xf]
    %v79 = vld [vmem:[#allocation5 + $0x38] sm:$0xf]
    %v80 = vld [vmem:[#allocation5 + $0x3c] sm:$0xf]
    %v81 = vld [vmem:[#allocation5 + $0x40] sm:$0xf]
    %v82 = vld [vmem:[#allocation5 + $0x44] sm:$0xf]
    %v83 = vld [vmem:[#allocation5 + $0x48] sm:$0xf]
    %v84 = vld [vmem:[#allocation5 + $0x4c] sm:$0xf]
    %v85 = vld [vmem:[#allocation5 + $0x50] sm:$0xf]
    %v86 = vld [vmem:[#allocation5 + $0x54] sm:$0xf]
    %v87 = vld [vmem:[#allocation5 + $0x58] sm:$0xf]
    %v88 = vld [vmem:[#allocation5 + $0x5c] sm:$0xf]
    %v89 = vld [vmem:[#allocation5 + $0x60] sm:$0xf]
    %v90 = vld [vmem:[#allocation5 + $0x64] sm:$0xf]
    %v91 = vld [vmem:[#allocation5 + $0x68] sm:$0xf]
    %v92 = vld [vmem:[#allocation5 + $0x6c] sm:$0xf]
    %v93 = vld [vmem:[#allocation5 + $0x70] sm:$0xf]
    %v94 = vld [vmem:[#allocation5 + $0x74] sm:$0xf]
    %v95 = vld [vmem:[#allocation5 + $0x78] sm:$0xf]
    %v96 = vld [vmem:[#allocation5 + $0x7c] sm:$0xf]
    %v97 = vld [vmem:[#allocation5 + $0x80] sm:$0xf]
    %v98 = vld [vmem:[#allocation5 + $0x84] sm:$0xf]
    %v99 = vld [vmem:[#allocation5 + $0x88] sm:$0xf]
    %v100 = vld [vmem:[#allocation5 + $0x8c] sm:$0xf]
    %v101 = vld [vmem:[#allocation5 + $0x90] sm:$0xf]
    %v102 = vld [vmem:[#allocation5 + $0x94] sm:$0xf]
    %v103 = vld [vmem:[#allocation5 + $0x98] sm:$0xf]
    %v104 = vld [vmem:[#allocation5 + $0x9c] sm:$0xf]
    %v105 = vld [vmem:[#allocation5 + $0xa0] sm:$0xf]
    %v106 = vld [vmem:[#allocation5 + $0xa4] sm:$0xf]
    %v107 = vld [vmem:[#allocation5 + $0xa8] sm:$0xf]
    %v108 = vld [vmem:[#allocation5 + $0xac] sm:$0xf]
    %v109 = vld [vmem:[#allocation5 + $0xb0] sm:$0xf]
    %v110 = vld [vmem:[#allocation5 + $0xb4] sm:$0xf]
    %v111 = vld [vmem:[#allocation5 + $0xb8] sm:$0xf]
    %v112 = vld [vmem:[#allocation5 + $0xbc] sm:$0xf]
    %v113 = vld [vmem:[#allocation5 + $0xc0] sm:$0xf]
    %v114 = vld [vmem:[#allocation5 + $0xc4] sm:$0xf]
    %v115 = vld [vmem:[#allocation5 + $0xc8] sm:$0xf]
    %v116 = vld [vmem:[#allocation5 + $0xcc] sm:$0xf]
    %v117 = vld [vmem:[#allocation5 + $0xd0] sm:$0xf]
    %v118 = vld [vmem:[#allocation5 + $0xd4] sm:$0xf]
    %v119 = vld [vmem:[#allocation5 + $0xd8] sm:$0xf]
    %v120 = vld [vmem:[#allocation5 + $0xdc] sm:$0xf]
    %v121 = vld [vmem:[#allocation5 + $0xe0] sm:$0xf]
    %v122 = vld [vmem:[#allocation5 + $0xe4] sm:$0xf]
    %v123 = vld [vmem:[#allocation5 + $0xe8] sm:$0xf]
    %v124 = vld [vmem:[#allocation5 + $0xec] sm:$0xf]
    %v125 = vld [vmem:[#allocation5 + $0xf0] sm:$0xf]
    %v126 = vld [vmem:[#allocation5 + $0xf4] sm:$0xf]
    %v127 = vld [vmem:[#allocation5 + $0xf8] sm:$0xf]
    %v128 = vld [vmem:[#allocation5 + $0xfc] sm:$0xf]
    %v129 = vld [vmem:[#allocation5 + $0x100] sm:$0xf]
    %v130 = vld [vmem:[#allocation5 + $0x104] sm:$0xf]
    %v131 = vld [vmem:[#allocation5 + $0x108] sm:$0xf]
    %v132 = vld [vmem:[#allocation5 + $0x10c] sm:$0xf]
    %v133 = vld [vmem:[#allocation5 + $0x110] sm:$0xf]
    %v134 = vld [vmem:[#allocation5 + $0x114] sm:$0xf]
    %v135 = vld [vmem:[#allocation5 + $0x118] sm:$0xf]
    %v136 = vld [vmem:[#allocation5 + $0x11c] sm:$0xf]
    %v137 = vld [vmem:[#allocation5 + $0x120] sm:$0xf]
    %v138 = vld [vmem:[#allocation5 + $0x124] sm:$0xf]
    %v139 = vld [vmem:[#allocation5 + $0x128] sm:$0xf]
    %v140 = vld [vmem:[#allocation5 + $0x12c] sm:$0xf]
    %v141 = vld [vmem:[#allocation5 + $0x130] sm:$0xf]
    %v142 = vld [vmem:[#allocation5 + $0x134] sm:$0xf]
    %v143 = vld [vmem:[#allocation5 + $0x138] sm:$0xf]
    %v144 = vld [vmem:[#allocation5 + $0x13c] sm:$0xf]
    %v145 = vld [vmem:[#allocation5 + $0x140] sm:$0xf]
    %v146 = vld [vmem:[#allocation5 + $0x144] sm:$0xf]
    %v147 = vld [vmem:[#allocation5 + $0x148] sm:$0xf]
    %v148 = vld [vmem:[#allocation5 + $0x14c] sm:$0xf]
    %v149 = vld [vmem:[#allocation5 + $0x150] sm:$0xf]
    %v150 = vld [vmem:[#allocation5 + $0x154] sm:$0xf]
    %v151 = vld [vmem:[#allocation5 + $0x158] sm:$0xf]
    %v152 = vld [vmem:[#allocation5 + $0x15c] sm:$0xf]
    %v153 = vld [vmem:[#allocation5 + $0x160] sm:$0xf]
    %v154 = vld [vmem:[#allocation5 + $0x164] sm:$0xf]
    %v155 = vld [vmem:[#allocation5 + $0x168] sm:$0xf]
    %v156 = vld [vmem:[#allocation5 + $0x16c] sm:$0xf]
    %v157 = vld [vmem:[#allocation5 + $0x170] sm:$0xf]
    %v158 = vld [vmem:[#allocation5 + $0x174] sm:$0xf]
    %v159 = vld [vmem:[#allocation5 + $0x178] sm:$0xf]
    %v160 = vld [vmem:[#allocation5 + $0x17c] sm:$0xf]
    %v161 = vld [vmem:[#allocation5 + $0x180] sm:$0xf]
    %v162 = vld [vmem:[#allocation5 + $0x184] sm:$0xf]
    %v163 = vld [vmem:[#allocation5 + $0x188] sm:$0xf]
    %v164 = vld [vmem:[#allocation5 + $0x18c] sm:$0xf]
    %v165 = vld [vmem:[#allocation5 + $0x190] sm:$0xf]
    %v166 = vld [vmem:[#allocation5 + $0x194] sm:$0xf]
    %v167 = vld [vmem:[#allocation5 + $0x198] sm:$0xf]
    %v168 = vld [vmem:[#allocation5 + $0x19c] sm:$0xf]
    %v169 = vld [vmem:[#allocation5 + $0x1a0] sm:$0xf]
    %v170 = vld [vmem:[#allocation5 + $0x1a4] sm:$0xf]
    %v171 = vld [vmem:[#allocation5 + $0x1a8] sm:$0xf]
    %v172 = vld [vmem:[#allocation5 + $0x1ac] sm:$0xf]
    %v173 = vld [vmem:[#allocation5 + $0x1b0] sm:$0xf]
    %v174 = vld [vmem:[#allocation5 + $0x1b4] sm:$0xf]
    %v175 = vld [vmem:[#allocation5 + $0x1b8] sm:$0xf]
    %v176 = vld [vmem:[#allocation5 + $0x1bc] sm:$0xf]
    %v177 = vld [vmem:[#allocation5 + $0x1c0] sm:$0xf]
    %v178 = vld [vmem:[#allocation5 + $0x1c4] sm:$0xf]
    %v179 = vld [vmem:[#allocation5 + $0x1c8] sm:$0xf]
    %v180 = vld [vmem:[#allocation5 + $0x1cc] sm:$0xf]
    %v181 = vld [vmem:[#allocation5 + $0x1d0] sm:$0xf]
    %v182 = vld [vmem:[#allocation5 + $0x1d4] sm:$0xf]
    %v183 = vld [vmem:[#allocation5 + $0x1d8] sm:$0xf]
    %v184 = vld [vmem:[#allocation5 + $0x1dc] sm:$0xf]
    %v185 = vld [vmem:[#allocation5 + $0x1e0] sm:$0xf]
    %v186 = vld [vmem:[#allocation5 + $0x1e4] sm:$0xf]
    %v187 = vld [vmem:[#allocation5 + $0x1e8] sm:$0xf]
    %v188 = vld [vmem:[#allocation5 + $0x1ec] sm:$0xf]
    %v189 = vld [vmem:[#allocation5 + $0x1f0] sm:$0xf]
    %v190 = vld [vmem:[#allocation5 + $0x1f4] sm:$0xf]
    %v191 = vld [vmem:[#allocation5 + $0x1f8] sm:$0xf]
    %v192 = vld [vmem:[#allocation5 + $0x1fc] sm:$0xf]
    %v197 = vunpack.c.l.b16 %v61
    %v198 = vunpack.c.h.b16 %v61
    %v199 = vunpack.c.l.b16 %v62
    %v200 = vunpack.c.h.b16 %v62
    %v201 = vunpack.c.l.b16 %v63
    %v202 = vunpack.c.h.b16 %v63
    %v203 = vunpack.c.l.b16 %v64
    %v204 = vunpack.c.h.b16 %v64
    %v205 = vpack.c.b16 %v197, %v197
    %v206 = vpack.c.b16 %v198, %v198
    %v207 = vpack.c.b16 %v199, %v199
    %v208 = vpack.c.b16 %v200, %v200
    %v209 = vpack.c.b16 %v201, %v201
    %v210 = vpack.c.b16 %v202, %v202
    %v211 = vpack.c.b16 %v203, %v203
    %v212 = vpack.c.b16 %v204, %v204
    %v349 = vunpack.c.l.b16 %v65
    %v350 = vunpack.c.l.b16 %v66
    %v351 = vunpack.c.l.b16 %v67
    %v352 = vunpack.c.l.b16 %v68
    %v353 = vunpack.c.l.b16 %v69
    %v354 = vunpack.c.l.b16 %v70
    %v355 = vunpack.c.l.b16 %v71
    %v356 = vunpack.c.l.b16 %v72
    %v357 = vunpack.c.l.b16 %v73
    %v358 = vunpack.c.l.b16 %v74
    %v359 = vunpack.c.l.b16 %v75
    %v360 = vunpack.c.l.b16 %v76
    %v361 = vunpack.c.l.b16 %v77
    %v362 = vunpack.c.l.b16 %v78
    %v363 = vunpack.c.l.b16 %v79
    %v364 = vunpack.c.l.b16 %v80
    %v365 = vunpack.c.l.b16 %v81
    %v366 = vunpack.c.l.b16 %v82
    %v367 = vunpack.c.l.b16 %v83
    %v368 = vunpack.c.l.b16 %v84
    %v369 = vunpack.c.l.b16 %v85
    %v370 = vunpack.c.l.b16 %v86
    %v371 = vunpack.c.l.b16 %v87
    %v372 = vunpack.c.l.b16 %v88
    %v373 = vunpack.c.l.b16 %v89
    %v374 = vunpack.c.l.b16 %v90
    %v375 = vunpack.c.l.b16 %v91
    %v376 = vunpack.c.l.b16 %v92
    %v377 = vunpack.c.l.b16 %v93
    %v378 = vunpack.c.l.b16 %v94
    %v379 = vunpack.c.l.b16 %v95
    %v380 = vunpack.c.l.b16 %v96
    %v381 = vunpack.c.l.b16 %v97
    %v382 = vunpack.c.l.b16 %v98
    %v383 = vunpack.c.l.b16 %v99
    %v384 = vunpack.c.l.b16 %v100
    %v385 = vunpack.c.l.b16 %v101
    %v386 = vunpack.c.l.b16 %v102
    %v387 = vunpack.c.l.b16 %v103
    %v388 = vunpack.c.l.b16 %v104
    %v389 = vunpack.c.l.b16 %v105
    %v390 = vunpack.c.l.b16 %v106
    %v391 = vunpack.c.l.b16 %v107
    %v392 = vunpack.c.l.b16 %v108
    %v393 = vunpack.c.l.b16 %v109
    %v394 = vunpack.c.l.b16 %v110
    %v395 = vunpack.c.l.b16 %v111
    %v396 = vunpack.c.l.b16 %v112
    %v397 = vunpack.c.l.b16 %v113
    %v398 = vunpack.c.l.b16 %v114
    %v399 = vunpack.c.l.b16 %v115
    %v400 = vunpack.c.l.b16 %v116
    %v401 = vunpack.c.l.b16 %v117
    %v402 = vunpack.c.l.b16 %v118
    %v403 = vunpack.c.l.b16 %v119
    %v404 = vunpack.c.l.b16 %v120
    %v405 = vunpack.c.l.b16 %v121
    %v406 = vunpack.c.l.b16 %v122
    %v407 = vunpack.c.l.b16 %v123
    %v408 = vunpack.c.l.b16 %v124
    %v409 = vunpack.c.l.b16 %v125
    %v410 = vunpack.c.l.b16 %v126
    %v411 = vunpack.c.l.b16 %v127
    %v412 = vunpack.c.l.b16 %v128
    %v413 = vunpack.c.l.b16 %v129
    %v414 = vunpack.c.l.b16 %v130
    %v415 = vunpack.c.l.b16 %v131
    %v416 = vunpack.c.l.b16 %v132
    %v417 = vunpack.c.l.b16 %v133
    %v418 = vunpack.c.l.b16 %v134
    %v419 = vunpack.c.l.b16 %v135
    %v420 = vunpack.c.l.b16 %v136
    %v421 = vunpack.c.l.b16 %v137
    %v422 = vunpack.c.l.b16 %v138
    %v423 = vunpack.c.l.b16 %v139
    %v424 = vunpack.c.l.b16 %v140
    %v425 = vunpack.c.l.b16 %v141
    %v426 = vunpack.c.l.b16 %v142
    %v427 = vunpack.c.l.b16 %v143
    %v428 = vunpack.c.l.b16 %v144
    %v429 = vunpack.c.l.b16 %v145
    %v430 = vunpack.c.l.b16 %v146
    %v431 = vunpack.c.l.b16 %v147
    %v432 = vunpack.c.l.b16 %v148
    %v433 = vunpack.c.l.b16 %v149
    %v434 = vunpack.c.l.b16 %v150
    %v435 = vunpack.c.l.b16 %v151
    %v436 = vunpack.c.l.b16 %v152
    %v437 = vunpack.c.l.b16 %v153
    %v438 = vunpack.c.l.b16 %v154
    %v439 = vunpack.c.l.b16 %v155
    %v440 = vunpack.c.l.b16 %v156
    %v441 = vunpack.c.l.b16 %v157
    %v442 = vunpack.c.l.b16 %v158
    %v443 = vunpack.c.l.b16 %v159
    %v444 = vunpack.c.l.b16 %v160
    %v445 = vunpack.c.l.b16 %v161
    %v446 = vunpack.c.l.b16 %v162
    %v447 = vunpack.c.l.b16 %v163
    %v448 = vunpack.c.l.b16 %v164
    %v449 = vunpack.c.l.b16 %v165
    %v450 = vunpack.c.l.b16 %v166
    %v451 = vunpack.c.l.b16 %v167
    %v452 = vunpack.c.l.b16 %v168
    %v453 = vunpack.c.l.b16 %v169
    %v454 = vunpack.c.l.b16 %v170
    %v455 = vunpack.c.l.b16 %v171
    %v456 = vunpack.c.l.b16 %v172
    %v457 = vunpack.c.l.b16 %v173
    %v458 = vunpack.c.l.b16 %v174
    %v459 = vunpack.c.l.b16 %v175
    %v460 = vunpack.c.l.b16 %v176
    %v461 = vunpack.c.l.b16 %v177
    %v462 = vunpack.c.l.b16 %v178
    %v463 = vunpack.c.l.b16 %v179
    %v464 = vunpack.c.l.b16 %v180
    %v465 = vunpack.c.l.b16 %v181
    %v466 = vunpack.c.l.b16 %v182
    %v467 = vunpack.c.l.b16 %v183
    %v468 = vunpack.c.l.b16 %v184
    %v469 = vunpack.c.l.b16 %v185
    %v470 = vunpack.c.l.b16 %v186
    %v471 = vunpack.c.l.b16 %v187
    %v472 = vunpack.c.l.b16 %v188
    %v473 = vunpack.c.l.b16 %v189
    %v474 = vunpack.c.l.b16 %v190
    %v475 = vunpack.c.l.b16 %v191
    %v476 = vunpack.c.l.b16 %v192
    %v477 = vpack.c.b16 %v350, %v349
    %v478 = vpack.c.b16 %v352, %v351
    %v479 = vpack.c.b16 %v354, %v353
    %v480 = vpack.c.b16 %v356, %v355
    %v481 = vpack.c.b16 %v358, %v357
    %v482 = vpack.c.b16 %v360, %v359
    %v483 = vpack.c.b16 %v362, %v361
    %v484 = vpack.c.b16 %v364, %v363
    %v485 = vpack.c.b16 %v366, %v365
    %v486 = vpack.c.b16 %v368, %v367
    %v487 = vpack.c.b16 %v370, %v369
    %v488 = vpack.c.b16 %v372, %v371
    %v489 = vpack.c.b16 %v374, %v373
    %v490 = vpack.c.b16 %v376, %v375
    %v491 = vpack.c.b16 %v378, %v377
    %v492 = vpack.c.b16 %v380, %v379
    %v493 = vpack.c.b16 %v382, %v381
    %v494 = vpack.c.b16 %v384, %v383
    %v495 = vpack.c.b16 %v386, %v385
    %v496 = vpack.c.b16 %v388, %v387
    %v497 = vpack.c.b16 %v390, %v389
    %v498 = vpack.c.b16 %v392, %v391
    %v499 = vpack.c.b16 %v394, %v393
    %v500 = vpack.c.b16 %v396, %v395
    %v501 = vpack.c.b16 %v398, %v397
    %v502 = vpack.c.b16 %v400, %v399
    %v503 = vpack.c.b16 %v402, %v401
    %v504 = vpack.c.b16 %v404, %v403
    %v505 = vpack.c.b16 %v406, %v405
    %v506 = vpack.c.b16 %v408, %v407
    %v507 = vpack.c.b16 %v410, %v409
    %v508 = vpack.c.b16 %v412, %v411
    %v509 = vpack.c.b16 %v414, %v413
    %v510 = vpack.c.b16 %v416, %v415
    %v511 = vpack.c.b16 %v418, %v417
    %v512 = vpack.c.b16 %v420, %v419
    %v513 = vpack.c.b16 %v422, %v421
    %v514 = vpack.c.b16 %v424, %v423
    %v515 = vpack.c.b16 %v426, %v425
    %v516 = vpack.c.b16 %v428, %v427
    %v517 = vpack.c.b16 %v430, %v429
    %v518 = vpack.c.b16 %v432, %v431
    %v519 = vpack.c.b16 %v434, %v433
    %v520 = vpack.c.b16 %v436, %v435
    %v521 = vpack.c.b16 %v438, %v437
    %v522 = vpack.c.b16 %v440, %v439
    %v523 = vpack.c.b16 %v442, %v441
    %v524 = vpack.c.b16 %v444, %v443
    %v525 = vpack.c.b16 %v446, %v445
    %v526 = vpack.c.b16 %v448, %v447
    %v527 = vpack.c.b16 %v450, %v449
    %v528 = vpack.c.b16 %v452, %v451
    %v529 = vpack.c.b16 %v454, %v453
    %v530 = vpack.c.b16 %v456, %v455
    %v531 = vpack.c.b16 %v458, %v457
    %v532 = vpack.c.b16 %v460, %v459
    %v533 = vpack.c.b16 %v462, %v461
    %v534 = vpack.c.b16 %v464, %v463
    %v535 = vpack.c.b16 %v466, %v465
    %v536 = vpack.c.b16 %v468, %v467
    %v537 = vpack.c.b16 %v470, %v469
    %v538 = vpack.c.b16 %v472, %v471
    %v539 = vpack.c.b16 %v474, %v473
    %v540 = vpack.c.b16 %v476, %v475
    %605 = vmatprep.subr.bf16.mxu0 0
    %606 = vmatpush1.bf16.msra.mxu0 %v477
    %607 = vmatprep.subr.bf16.mxu0 0
    %608 = vmatpush1.bf16.msra.mxu0 %v478
    %609 = vmatprep.subr.bf16.mxu0 0
    %610 = vmatpush1.bf16.msra.mxu0 %v479
    %611 = vmatprep.subr.bf16.mxu0 0
    %612 = vmatpush1.bf16.msra.mxu0 %v480
    %613 = vmatprep.subr.bf16.mxu0 0
    %614 = vmatpush1.bf16.msra.mxu0 %v481
    %615 = vmatprep.subr.bf16.mxu0 0
    %616 = vmatpush1.bf16.msra.mxu0 %v482
    %617 = vmatprep.subr.bf16.mxu0 0
    %618 = vmatpush1.bf16.msra.mxu0 %v483
    %619 = vmatprep.subr.bf16.mxu0 0
    %620 = vmatpush1.bf16.msra.mxu0 %v484
    %621 = vmatprep.subr.bf16.mxu0 0
    %622 = vmatpush1.bf16.msra.mxu0 %v485
    %623 = vmatprep.subr.bf16.mxu0 0
    %624 = vmatpush1.bf16.msra.mxu0 %v486
    %625 = vmatprep.subr.bf16.mxu0 0
    %626 = vmatpush1.bf16.msra.mxu0 %v487
    %627 = vmatprep.subr.bf16.mxu0 0
    %628 = vmatpush1.bf16.msra.mxu0 %v488
    %629 = vmatprep.subr.bf16.mxu0 0
    %630 = vmatpush1.bf16.msra.mxu0 %v489
    %631 = vmatprep.subr.bf16.mxu0 0
    %632 = vmatpush1.bf16.msra.mxu0 %v490
    %633 = vmatprep.subr.bf16.mxu0 0
    %634 = vmatpush1.bf16.msra.mxu0 %v491
    %635 = vmatprep.subr.bf16.mxu0 0
    %636 = vmatpush1.bf16.msra.mxu0 %v492
    %637 = vmatprep.mubr.bf16.mxu0 %v206
    %638 = vmatmul.mubr.bf16.gmra.mrb[0].mxu0 %v205
    %v639 = vpop.f32.mrb[0].mxu0
    %v640 = vadd.f32 0.0, %v639
    %v641 = vpop.f32.mrb[0].mxu0
    %v642 = vpop.f32.mrb[0].mxu0
    %v643 = vpop.f32.mrb[0].mxu0
    %644 = vdwg.mxu0
    %645 = vmatprep.subr.bf16.mxu0 0
    %646 = vmatpush1.bf16.msra.mxu0 %v493
    %647 = vmatprep.subr.bf16.mxu0 0
    %648 = vmatpush1.bf16.msra.mxu0 %v494
    %649 = vmatprep.subr.bf16.mxu0 0
    %650 = vmatpush1.bf16.msra.mxu0 %v495
    %651 = vmatprep.subr.bf16.mxu0 0
    %652 = vmatpush1.bf16.msra.mxu0 %v496
    %653 = vmatprep.subr.bf16.mxu0 0
    %654 = vmatpush1.bf16.msra.mxu0 %v497
    %655 = vmatprep.subr.bf16.mxu0 0
    %656 = vmatpush1.bf16.msra.mxu0 %v498
    %657 = vmatprep.subr.bf16.mxu0 0
    %658 = vmatpush1.bf16.msra.mxu0 %v499
    %659 = vmatprep.subr.bf16.mxu0 0
    %660 = vmatpush1.bf16.msra.mxu0 %v500
    %661 = vmatprep.subr.bf16.mxu0 0
    %662 = vmatpush1.bf16.msra.mxu0 %v501
    %663 = vmatprep.subr.bf16.mxu0 0
    %664 = vmatpush1.bf16.msra.mxu0 %v502
    %665 = vmatprep.subr.bf16.mxu0 0
    %666 = vmatpush1.bf16.msra.mxu0 %v503
    %667 = vmatprep.subr.bf16.mxu0 0
    %668 = vmatpush1.bf16.msra.mxu0 %v504
    %669 = vmatprep.subr.bf16.mxu0 0
    %670 = vmatpush1.bf16.msra.mxu0 %v505
    %671 = vmatprep.subr.bf16.mxu0 0
    %672 = vmatpush1.bf16.msra.mxu0 %v506
    %673 = vmatprep.subr.bf16.mxu0 0
    %674 = vmatpush1.bf16.msra.mxu0 %v507
    %675 = vmatprep.subr.bf16.mxu0 0
    %676 = vmatpush1.bf16.msra.mxu0 %v508
    %677 = vmatprep.mubr.bf16.mxu0 %v208
    %678 = vmatmul.mubr.bf16.gmra.mrb[0].mxu0 %v207
    %v679 = vpop.f32.mrb[0].mxu0
    %v680 = vadd.f32 %v640, %v679
    %v681 = vpop.f32.mrb[0].mxu0
    %v682 = vpop.f32.mrb[0].mxu0
    %v683 = vpop.f32.mrb[0].mxu0
    %684 = vdwg.mxu0
    %685 = vmatprep.subr.bf16.mxu0 0
    %686 = vmatpush1.bf16.msra.mxu0 %v509
    %687 = vmatprep.subr.bf16.mxu0 0
    %688 = vmatpush1.bf16.msra.mxu0 %v510
    %689 = vmatprep.subr.bf16.mxu0 0
    %690 = vmatpush1.bf16.msra.mxu0 %v511
    %691 = vmatprep.subr.bf16.mxu0 0
    %692 = vmatpush1.bf16.msra.mxu0 %v512
    %693 = vmatprep.subr.bf16.mxu0 0
    %694 = vmatpush1.bf16.msra.mxu0 %v513
    %695 = vmatprep.subr.bf16.mxu0 0
    %696 = vmatpush1.bf16.msra.mxu0 %v514
    %697 = vmatprep.subr.bf16.mxu0 0
    %698 = vmatpush1.bf16.msra.mxu0 %v515
    %699 = vmatprep.subr.bf16.mxu0 0
    %700 = vmatpush1.bf16.msra.mxu0 %v516
    %701 = vmatprep.subr.bf16.mxu0 0
    %702 = vmatpush1.bf16.msra.mxu0 %v517
    %703 = vmatprep.subr.bf16.mxu0 0
    %704 = vmatpush1.bf16.msra.mxu0 %v518
    %705 = vmatprep.subr.bf16.mxu0 0
    %706 = vmatpush1.bf16.msra.mxu0 %v519
    %707 = vmatprep.subr.bf16.mxu0 0
    %708 = vmatpush1.bf16.msra.mxu0 %v520
    %709 = vmatprep.subr.bf16.mxu0 0
    %710 = vmatpush1.bf16.msra.mxu0 %v521
    %711 = vmatprep.subr.bf16.mxu0 0
    %712 = vmatpush1.bf16.msra.mxu0 %v522
    %713 = vmatprep.subr.bf16.mxu0 0
    %714 = vmatpush1.bf16.msra.mxu0 %v523
    %715 = vmatprep.subr.bf16.mxu0 0
    %716 = vmatpush1.bf16.msra.mxu0 %v524
    %717 = vmatprep.mubr.bf16.mxu0 %v210
    %718 = vmatmul.mubr.bf16.gmra.mrb[0].mxu0 %v209
    %v719 = vpop.f32.mrb[0].mxu0
    %v720 = vadd.f32 %v680, %v719
    %v721 = vpop.f32.mrb[0].mxu0
    %v722 = vpop.f32.mrb[0].mxu0
    %v723 = vpop.f32.mrb[0].mxu0
    %724 = vdwg.mxu0
    %725 = vmatprep.subr.bf16.mxu0 0
    %726 = vmatpush1.bf16.msra.mxu0 %v525
    %727 = vmatprep.subr.bf16.mxu0 0
    %728 = vmatpush1.bf16.msra.mxu0 %v526
    %729 = vmatprep.subr.bf16.mxu0 0
    %730 = vmatpush1.bf16.msra.mxu0 %v527
    %731 = vmatprep.subr.bf16.mxu0 0
    %732 = vmatpush1.bf16.msra.mxu0 %v528
    %733 = vmatprep.subr.bf16.mxu0 0
    %734 = vmatpush1.bf16.msra.mxu0 %v529
    %735 = vmatprep.subr.bf16.mxu0 0
    %736 = vmatpush1.bf16.msra.mxu0 %v530
    %737 = vmatprep.subr.bf16.mxu0 0
    %738 = vmatpush1.bf16.msra.mxu0 %v531
    %739 = vmatprep.subr.bf16.mxu0 0
    %740 = vmatpush1.bf16.msra.mxu0 %v532
    %741 = vmatprep.subr.bf16.mxu0 0
    %742 = vmatpush1.bf16.msra.mxu0 %v533
    %743 = vmatprep.subr.bf16.mxu0 0
    %744 = vmatpush1.bf16.msra.mxu0 %v534
    %745 = vmatprep.subr.bf16.mxu0 0
    %746 = vmatpush1.bf16.msra.mxu0 %v535
    %747 = vmatprep.subr.bf16.mxu0 0
    %748 = vmatpush1.bf16.msra.mxu0 %v536
    %749 = vmatprep.subr.bf16.mxu0 0
    %750 = vmatpush1.bf16.msra.mxu0 %v537
    %751 = vmatprep.subr.bf16.mxu0 0
    %752 = vmatpush1.bf16.msra.mxu0 %v538
    %753 = vmatprep.subr.bf16.mxu0 0
    %754 = vmatpush1.bf16.msra.mxu0 %v539
    %755 = vmatprep.subr.bf16.mxu0 0
    %756 = vmatpush1.bf16.msra.mxu0 %v540
    %757 = vmatprep.mubr.bf16.mxu0 %v212
    %758 = vmatmul.mubr.bf16.gmra.mrb[0].mxu0 %v211
    %v759 = vpop.f32.mrb[0].mxu0
    %v760 = vadd.f32 %v720, %v759
    %v761 = vpop.f32.mrb[0].mxu0
    %v762 = vpop.f32.mrb[0].mxu0
    %v763 = vpop.f32.mrb[0].mxu0
    %764 = vdwg.mxu0
    %v765 = vld [vmem:[#allocation7] sm:$0xff]
    %v766 = vld [vmem:[#allocation7 + $0x8] sm:$0xff]
    %v767 = vld [vmem:[#allocation7 + $0x10] sm:$0xff]
    %v768 = vld [vmem:[#allocation7 + $0x18] sm:$0xff]
    %v769 = vld [vmem:[#allocation7 + $0x20] sm:$0xff]
    %v770 = vld [vmem:[#allocation7 + $0x28] sm:$0xff]
    %v771 = vld [vmem:[#allocation7 + $0x30] sm:$0xff]
    %v772 = vld [vmem:[#allocation7 + $0x38] sm:$0xff]
    %v773 = vld [vmem:[#allocation7 + $0x40] sm:$0xff]
    %v774 = vld [vmem:[#allocation7 + $0x48] sm:$0xff]
    %v775 = vld [vmem:[#allocation7 + $0x50] sm:$0xff]
    %v776 = vld [vmem:[#allocation7 + $0x58] sm:$0xff]
    %v777 = vld [vmem:[#allocation7 + $0x60] sm:$0xff]
    %v778 = vld [vmem:[#allocation7 + $0x68] sm:$0xff]
    %v779 = vld [vmem:[#allocation7 + $0x70] sm:$0xff]
    %v780 = vld [vmem:[#allocation7 + $0x78] sm:$0xff]
    %v781 = vld [vmem:[%s3] sm:$0x1]
    %v782 = vld [vmem:[%s4] sm:$0xff]
    %v784 = vlaneseq
    %v785 = vshrl.u32 %v784, 7
    %v786 = vsub.s32 0, %v785
    %v787 = vrot.slane %v781, %v786
    %789 = vmatprep.subr.mxu0 0.0
    %790 = vmatpush1.msra.mxu0 %v765
    %791 = vmatprep.subr.mxu0 0.0
    %792 = vmatpush1.msra.mxu0 %v766
    %793 = vmatprep.subr.mxu0 0.0
    %794 = vmatpush1.msra.mxu0 %v767
    %795 = vmatprep.subr.mxu0 0.0
    %796 = vmatpush1.msra.mxu0 %v768
    %797 = vmatprep.subr.mxu0 0.0
    %798 = vmatpush1.msra.mxu0 %v769
    %799 = vmatprep.subr.mxu0 0.0
    %800 = vmatpush1.msra.mxu0 %v770
    %801 = vmatprep.subr.mxu0 0.0
    %802 = vmatpush1.msra.mxu0 %v771
    %803 = vmatprep.subr.mxu0 0.0
    %804 = vmatpush1.msra.mxu0 %v772
    %805 = vmatprep.subr.mxu0 0.0
    %806 = vmatpush1.msra.mxu0 %v773
    %807 = vmatprep.subr.mxu0 0.0
    %808 = vmatpush1.msra.mxu0 %v774
    %809 = vmatprep.subr.mxu0 0.0
    %810 = vmatpush1.msra.mxu0 %v775
    %811 = vmatprep.subr.mxu0 0.0
    %812 = vmatpush1.msra.mxu0 %v776
    %813 = vmatprep.subr.mxu0 0.0
    %814 = vmatpush1.msra.mxu0 %v777
    %815 = vmatprep.subr.mxu0 0.0
    %816 = vmatpush1.msra.mxu0 %v778
    %817 = vmatprep.subr.mxu0 0.0
    %818 = vmatpush1.msra.mxu0 %v779
    %819 = vmatprep.subr.mxu0 0.0
    %820 = vmatpush1.msra.mxu0 %v780
    %821 = vmatprep.subr.mxu0 0.0
    %822 = vmatpush1.msra.mxu0 0.0
    %823 = vmatprep.subr.mxu0 0.0
    %824 = vmatpush1.msra.mxu0 0.0
    %825 = vmatprep.subr.mxu0 0.0
    %826 = vmatpush1.msra.mxu0 0.0
    %827 = vmatprep.subr.mxu0 0.0
    %828 = vmatpush1.msra.mxu0 0.0
    %829 = vmatprep.subr.mxu0 0.0
    %830 = vmatpush1.msra.mxu0 0.0
    %831 = vmatprep.subr.mxu0 0.0
    %832 = vmatpush1.msra.mxu0 0.0
    %833 = vmatprep.subr.mxu0 0.0
    %834 = vmatpush1.msra.mxu0 0.0
    %835 = vmatprep.subr.mxu0 0.0
    %836 = vmatpush1.msra.mxu0 0.0
    %837 = vmatprep.subr.mxu0 0.0
    %838 = vmatpush1.msra.mxu0 0.0
    %839 = vmatprep.subr.mxu0 0.0
    %840 = vmatpush1.msra.mxu0 0.0
    %841 = vmatprep.subr.mxu0 0.0
    %842 = vmatpush1.msra.mxu0 0.0
    %843 = vmatprep.subr.mxu0 0.0
    %844 = vmatpush1.msra.mxu0 0.0
    %845 = vmatprep.subr.mxu0 0.0
    %846 = vmatpush1.msra.mxu0 0.0
    %847 = vmatprep.subr.mxu0 0.0
    %848 = vmatpush1.msra.mxu0 0.0
    %849 = vmatprep.subr.mxu0 0.0
    %850 = vmatpush1.msra.mxu0 0.0
    %851 = vmatprep.subr.mxu0 0.0
    %852 = vmatpush1.msra.mxu0 0.0
    %853 = vmatprep.mubr.f32.mxu0 0.0
    %854 = vmatmul.mubr.f32.gmra.mrb[0].mxu0 %v760
    %v855 = vpop.f32.mrb[0].mxu0
    %v856 = vadd.f32 %v787, %v855
    %v857 = vpop.f32.mrb[0].mxu0
    %858 = vdwg.mxu0
    %v859 = vlaneseq
    %v860 = vand.u32 %v859, 127
    %vm861 = vcmp.eq.s32.totalorder %v782, 0
    %vm862 = vcmp.eq.s32.totalorder %v782, 1
    %v863 = vsel %vm862, 10, 16
    %v864 = vsel %vm861, 0, %v863
    %v865 = vsel %vm862, 6, 2
    %v866 = vsel %vm861, 10, %v865
    %867 = vset.pattern.permute.xlu0 0
    %868 = vperm.xlu0 %867, %v864
    %v869 = vpop.permute.xlu0 %868
    %vm870 = vcmp.ge.s32.totalorder %v860, %v869
    %v871 = vadd.s32 %v864, %v866
    %872 = vset.pattern.permute.xlu0 0
    %873 = vperm.xlu0 %872, %v871
    %v874 = vpop.permute.xlu0 %873
    %vm875 = vcmp.lt.s32.totalorder %v860, %v874
    %vm876 = vmand %vm870, %vm875
    %v877 = vsel %vm876, %v856, -1e+30
    %878 = vmax.xlane.f32.xlu0 %v877
    %v879 = vpop.xlane.xlu0 %878
    %v880 = vsub.f32 %v877, %v879
    %v881 = vmul.f32 %v880, 1.442695
    %v882 = vpow.pop %v881
    %883 = vadd.xlane.f32.xlu0 %v882
    %v884 = vpop.xlane.xlu0 %883
    %v885 = vlog2.pop %v884
    %v886 = vmul.f32 %v885, 0.6931472
    %v887 = vadd.f32 %v879, %v886
    %888 = vrot.lane.b32.xlu0 %v782, 127
    %v889 = vpop.permute.xlu0 %888
    %v890 = vadd.s32 %v864, %v889
    %891 = vset.pattern.permute.xlu0 0
    %892 = vperm.xlu0 %891, %v890
    %v893 = vpop.permute.xlu0 %892
    %vm894 = vcmp.eq.s32.totalorder %v860, %v893
    %v895 = vsel %vm894, %v856, 0.0
    %896 = vadd.xlane.f32.xlu0 %v895
    %v897 = vpop.xlane.xlu0 %896
    %v898 = vsub.f32 %v887, %v897
    %vm899 = vcmp.eq.f32.partialorder %v877, %v879
    %v900 = vsel %vm899, %v860, 128
    %v901 = vand.u32 %v900, 65535
    %v902 = vshra.s32 %v900, 16
    %v903 = vcvt.s32.f32 %v901
    %v904 = vcvt.s32.f32 %v902
    %905 = vmin.xlane.f32.xlu0 %v904
    %v906 = vpop.xlane.xlu0 %905
    %vm907 = vcmp.eq.f32.partialorder %v904, %v906
    %v908 = vsel %vm907, %v903, inf
    %909 = vmin.xlane.f32.xlu0 %v908
    %v910 = vpop.xlane.xlu0 %909
    %v911 = vcvt.f32.s32 %v910
    %v912 = vcvt.f32.s32 %v906
    %v913 = vshll.u32 %v912, 16
    %v914 = vadd.s32 %v913, %v911
    %v915 = vsub.s32 %v914, %v864
    %vm916 = vcmp.eq.s32.totalorder %v860, 0
    %vm917 = vcmp.eq.s32.totalorder %v860, 1
    %v918 = vcvt.s32.f32 %v915
    %920 = vset.pattern.permute.xlu0 0
    %921 = vperm.xlu0 %920, %v918
    %v922 = vpop.permute.xlu0 %921
    %v924 = vsel %vm917, %v922, 0.0
    %v925 = vsel %vm916, %v898, %v924
    %926 = vst [vmem:[#allocation8] sm:$0xff] %v925
    // Predicated region
    $region34: #{tpu_custom_call.1} parent=1 // pred_check
      _
    $region35: #{tpu_custom_call.1} parent=1 // pred_check_branch
      %928 = sbr.rel (0) target = $region37
    $region36: #{tpu_custom_call.1} parent=1 // pred_region
      %s930 = ssub.s32 128, 128
      %931 = vsyncadd [#allocation4], %s930
      %s933 = sshll.u32 [#allocation8], 4
      %s934 = int_to_ptr.vmem [resolvable:$true] %s933
      %936 = dma.vmem_to_hbm [thread:$0]  %s934, 128, %s5, [#allocation4]
    $region37: #{tpu_custom_call.1} parent=1 // pred_fallthru
      _
    // Predicated region
    $region38: #{tpu_custom_call.1} parent=1 // pred_check
      _
    $region39: #{tpu_custom_call.1} parent=1 // pred_check_branch
      %938 = sbr.rel (0) target = $region41
    $region40: #{tpu_custom_call.1} parent=1 // pred_region
      %939 = dma.done [#allocation4], 128
    $region41: #{tpu_custom_call.1} parent=1 // pred_fallthru
      _
    %940 = vsyncpa [#allocation3], 1
    %941 = vsyncpa [#allocation6], 1
    %942 = vsyncpa [#allocation4], 1

</llo_original>
